<compile_context>
chip_gen: v7x
topology: tpu7x:2x2x1
jax: 0.10.0
libtpu: 0.0.40
codegen_flags: <defaults>
</compile_context>

<pallas_src>
import functools
import math

import jax
import jax.numpy as jnp
from jax.experimental import pallas as pl
from jax.experimental.pallas import tpu as pltpu


_MAX_PACKED_LANES = 512   # cap on the packed lane width k*C
_STATS_PARTIALS = 2       # leading "parallel" axis of the stats pass (v7x: 2 TCs)


def _tpu_vmem_bytes():
    """Per-core VMEM capacity; conservative 64 MiB (v7x) if the query fails."""
    try:
        info = pltpu.get_tpu_info()
        cap = getattr(info, "vmem_capacity_bytes", None)
        if cap:
            return int(cap)
    except Exception:
        pass
    return 64 * 1024 * 1024


def _packing_factor(n_ch):
    """Rows folded into the lane axis so k*C is a multiple of 128."""
    if n_ch % 128 == 0:
        return 1
    k = 128 // math.gcd(n_ch, 128)          # k = lcm(C, 128) // C
    if k * n_ch > _MAX_PACKED_LANES:
        return 1                            # awkward C: unpacked fallback
    return k


def _pick_tile_rows(row_f32_bytes, rp, sublanes, target_bytes):
    cap = max(sublanes, (rp // sublanes) * sublanes)   # keep block rows <= array rows
    t = max(target_bytes // max(row_f32_bytes, 1), sublanes)
    t = max(sublanes, (t // sublanes) * sublanes)
    return min(t, cap)


# ---------------------------------------------------------------------------
# Fused kernel: whole (packed) tensor resident in VMEM.  Stats + normalize in
# one pass -> x is read from HBM exactly once.
# ---------------------------------------------------------------------------
def _fused_bn_kernel(x_ref, g_ref, b_ref, o_ref, *, n_valid, eps, n_ch):
    xt = x_ref[...].astype(jnp.float32)                    # (Rp, kC)
    s = jnp.sum(xt, axis=0, keepdims=True)                 # (1, kC) per packed column
    q = jnp.sum(xt * xt, axis=0, keepdims=True)
    kc = s.shape[-1]
    if kc != n_ch:
        # Packed column j*C + c holds channel c.  Fold sums of all columns of
        # the same channel together AND broadcast the result back to the
        # packed layout with one 0/1 matmul M[a, b] = (a % C == b % C).
        # (Avoids lane reshapes / gathers inside the kernel.)
        row_c = jax.lax.broadcasted_iota(jnp.int32, (kc, kc), 0) % n_ch
        col_c = jax.lax.broadcasted_iota(jnp.int32, (kc, kc), 1) % n_ch
        m = (row_c == col_c).astype(jnp.float32)
        s = jnp.dot(s, m, preferred_element_type=jnp.float32)
        q = jnp.dot(q, m, preferred_element_type=jnp.float32)
    inv_n = 1.0 / n_valid
    mean = s * inv_n
    var = jnp.maximum(q * inv_n - mean * mean, 0.0)  # biased variance, clamped >= 0
    rstd = jax.lax.rsqrt(var + eps)
    scale = g_ref[...] * rstd                        # gamma already tiled to (1, kC)
    shift = b_ref[...] - mean * scale
    o_ref[...] = (xt * scale + shift).astype(o_ref.dtype)


# ---------------------------------------------------------------------------
# Two-pass path, pass 1: per packed-column sum / sum-of-squares over row
# tiles.  Leading grid axis c (size _STATS_PARTIALS, "parallel") splits the
# row range across TensorCores; each partial accumulates into its own (8, kC)
# output block with pure vreg adds.  The ragged last tile and any wholly
# out-of-range tile of a partial are masked to zero.
# ---------------------------------------------------------------------------
def _stats_kernel(x_ref, sum_ref, sq_ref, *, tile_rows, rows_valid, tiles_per_part):
    c = pl.program_id(0)
    i = pl.program_id(1)

    @pl.when(i == 0)
    def _():
        sum_ref[...] = jnp.zeros_like(sum_ref)
        sq_ref[...] = jnp.zeros_like(sq_ref)

    xt = x_ref[...].astype(jnp.float32)                    # (tile_rows, kC)
    base = (c * tiles_per_part + i) * tile_rows
    row = jax.lax.broadcasted_iota(jnp.int32, xt.shape, 0) + base
    xt = jnp.where(row < rows_valid, xt, 0.0)

    tr, kc = xt.shape
    x3 = xt.reshape(tr // 8, 8, kc)                        # sublane-group view
    sum_ref[...] += jnp.sum(x3, axis=0)                    # VPU adds only
    sq_ref[...] += jnp.sum(x3 * x3, axis=0)


# ---------------------------------------------------------------------------
# Two-pass path, pass 2: y = x * scale + shift in f32 (scale/shift already
# tiled to the packed (1, kC) layout in the wrapper), single cast on store.
# Out-of-bounds rows of the ragged last tile are dropped by Pallas.
# ---------------------------------------------------------------------------
def _norm_kernel(x_ref, scale_ref, shift_ref, o_ref):
    xt = x_ref[...].astype(jnp.float32)
    o_ref[...] = (xt * scale_ref[...] + shift_ref[...]).astype(o_ref.dtype)


def transpose_batchnorm1d(x, gamma, beta, *, eps=1e-5, tile_rows=None,
                          force_two_pass=False):
    """x: (B, L, C); gamma/beta: (C,).  Training-mode BatchNorm over channels."""
    B, L, C = x.shape
    N = B * L
    itemsize = jnp.dtype(x.dtype).itemsize
    sublanes = max(8, 32 // max(itemsize, 1))       # 8 f32, 16 bf16, 32 int8/fp8

    # ---- lane-dense packing: fold k rows into the lane axis ----------------
    k = _packing_factor(C)
    if N < k:
        k = 1
    kc = k * C
    rp = N // k
    t = N - rp * k                                  # ragged original rows (< k)
    rp_c = rp + (1 if t else 0)                     # packed rows incl. pad-to-k
    n_pad = rp_c * k

    x2d = x.reshape(N, C)
    if t:
        # TODO(synk): this pad (and the matching [:N] slice below) costs one
        # extra HBM round-trip; it is only hit when (B*L) % k != 0.
        x2d = jnp.pad(x2d, ((0, n_pad - N), (0, 0)))   # zero rows: no effect on sums
    xp = x2d.reshape(rp_c, kc)                          # free reshape (contiguous)

    gamma_f = gamma.astype(jnp.float32).reshape(1, C)
    beta_f = beta.astype(jnp.float32).reshape(1, C)

    vmem_cap = _tpu_vmem_bytes()
    vmem_limit = (3 * vmem_cap) // 4                # 96 MiB v5e/v6e, 48 MiB v7x
    f32_bytes = rp_c * kc * 4

    can_tile = rp_c >= sublanes
    fused = (not can_tile) or ((not force_two_pass)
                               and f32_bytes <= vmem_limit // 10)

    if fused:
        g_t = jnp.tile(gamma_f, (1, k))
        b_t = jnp.tile(beta_f, (1, k))
        kernel = functools.partial(_fused_bn_kernel, n_valid=float(N),
                                   eps=float(eps), n_ch=C)
        yp = pl.pallas_call(
            kernel,
            out_shape=jax.ShapeDtypeStruct((rp_c, kc), x.dtype),
            grid_spec=pltpu.PrefetchScalarGridSpec(
                num_scalar_prefetch=0,
                grid=(1,),
                in_specs=[pl.BlockSpec((rp_c, kc), lambda i: (0, 0)),
                          pl.BlockSpec((1, kc), lambda i: (0, 0)),
                          pl.BlockSpec((1, kc), lambda i: (0, 0))],
                out_specs=pl.BlockSpec((rp_c, kc), lambda i: (0, 0)),
            ),
            compiler_params=pltpu.CompilerParams(
                dimension_semantics=("arbitrary",),
                vmem_limit_bytes=vmem_limit),
        )(xp, g_t, b_t)
    else:
        row_f32 = kc * 4
        if tile_rows is None:
            # Stats pass is read-only (2x buffering) -> bigger tiles than the
            # in+out normalize pass; both derived from the per-gen VMEM budget.
            tr_stats = _pick_tile_rows(row_f32, rp_c, sublanes, vmem_cap // 12)
            tr_norm = _pick_tile_rows(row_f32, rp_c, sublanes, vmem_cap // 16)
        else:
            tr = max(sublanes, (int(tile_rows) // sublanes) * sublanes)
            tr = min(tr, max(sublanes, (rp_c // sublanes) * sublanes))
            tr_stats = tr_norm = tr

        # ---- pass 1: per packed-column sums (2 TensorCore partials) --------
        n_tiles = pl.cdiv(rp_c, tr_stats)
        tpc = pl.cdiv(n_tiles, _STATS_PARTIALS)
        stats_kernel = functools.partial(_stats_kernel, tile_rows=tr_stats,
                                         rows_valid=rp_c, tiles_per_part=tpc)

        def x_stats_map(c, i):
            # Clamp the block index; wholly out-of-range tiles are zero-masked
            # inside the kernel (mask uses the unclamped logical position).
            return (jnp.minimum(c * tpc + i, n_tiles - 1), 0)

        sums, sqs = pl.pallas_call(
            stats_kernel,
            out_shape=(jax.ShapeDtypeStruct((_STATS_PARTIALS * 8, kc), jnp.float32),
                       jax.ShapeDtypeStruct((_STATS_PARTIALS * 8, kc), jnp.float32)),
            grid_spec=pltpu.PrefetchScalarGridSpec(
                num_scalar_prefetch=0,
                grid=(_STATS_PARTIALS, tpc),
                in_specs=[pl.BlockSpec((tr_stats, kc), x_stats_map)],
                out_specs=(pl.BlockSpec((8, kc), lambda c, i: (c, 0)),
                           pl.BlockSpec((8, kc), lambda c, i: (c, 0))),
            ),
            compiler_params=pltpu.CompilerParams(
                dimension_semantics=("parallel", "arbitrary"),
                vmem_limit_bytes=vmem_limit),
        )(xp)

        # ---- hoisted per-channel scale/shift (tiny (C,) math, plain JAX) ----
        s = jnp.sum(sums, axis=0).reshape(k, C).sum(axis=0)
        q = jnp.sum(sqs, axis=0).reshape(k, C).sum(axis=0)
        inv_n = 1.0 / float(N)
        mean = s * inv_n
        var = jnp.maximum(q * inv_n - mean * mean, 0.0)   # biased, clamped >= 0
        rstd = jax.lax.rsqrt(var + float(eps))
        scale = gamma_f[0] * rstd
        shift = beta_f[0] - mean * scale
        scale_t = jnp.tile(scale.reshape(1, C), (1, k))   # stays f32: pass-2 FMA in f32
        shift_t = jnp.tile(shift.reshape(1, C), (1, k))

        # ---- pass 2: normalize ---------------------------------------------
        grid2 = (pl.cdiv(rp_c, tr_norm),)
        yp = pl.pallas_call(
            _norm_kernel,
            out_shape=jax.ShapeDtypeStruct((rp_c, kc), x.dtype),
            grid_spec=pltpu.PrefetchScalarGridSpec(
                num_scalar_prefetch=0,
                grid=grid2,
                in_specs=[pl.BlockSpec((tr_norm, kc), lambda i: (i, 0)),
                          pl.BlockSpec((1, kc), lambda i: (0, 0)),
                          pl.BlockSpec((1, kc), lambda i: (0, 0))],
                out_specs=pl.BlockSpec((tr_norm, kc), lambda i: (i, 0)),
            ),
            compiler_params=pltpu.CompilerParams(
                dimension_semantics=("parallel",),
                vmem_limit_bytes=vmem_limit),
        )(xp, scale_t, shift_t)

    if t:
        return yp.reshape(n_pad, C)[:N].reshape(B, L, C)
    return yp.reshape(B, L, C)


def _reference(x, gamma, beta, eps=1e-5):
    # Pure-JAX reference of training-mode BatchNorm1d over channels (last dim).
    xf = x.astype(jnp.float32)
    mean = jnp.mean(xf, axis=(0, 1), keepdims=True)
    var = jnp.mean((xf - mean) ** 2, axis=(0, 1), keepdims=True)   # biased
    y = (xf - mean) * jax.lax.rsqrt(var + eps)
    return (y * gamma.astype(jnp.float32).reshape(1, 1, -1)
            + beta.astype(jnp.float32).reshape(1, 1, -1)).astype(x.dtype)


if __name__ == "__main__":
    root = jax.random.PRNGKey(0)

    def check(B, L, C, *, dtype=jnp.float32, affine_random=True, **kw):
        kx, kg, kb = jax.random.split(
            jax.random.fold_in(root, B * 100003 + L * 131 + C), 3)
        x = (jax.random.normal(kx, (B, L, C), dtype=jnp.float32) * 2.0
             + 0.5).astype(dtype)
        if affine_random:
            gamma = 1.0 + 0.1 * jax.random.normal(kg, (C,), dtype=jnp.float32)
            beta = 0.1 * jax.random.normal(kb, (C,), dtype=jnp.float32)
        else:
            # nn.BatchNorm1d init: weight = ones(C), bias = zeros(C)
            gamma = jnp.ones((C,), dtype=jnp.float32)
            beta = jnp.zeros((C,), dtype=jnp.float32)
        y = jax.block_until_ready(transpose_batchnorm1d(x, gamma, beta, **kw))
        y_ref = _reference(x, gamma, beta)
        assert y.shape == (B, L, C)
        tol = 3e-2 if dtype == jnp.bfloat16 else 1e-4
        assert jnp.allclose(y.astype(jnp.float32), y_ref.astype(jnp.float32),
                            atol=tol, rtol=tol), \
            f"mismatch for shape {(B, L, C)} dtype={dtype} kwargs={kw}"

    # Fused path with module-init affine; lane packing C=32 -> k=4 (128 lanes).
    check(2, 8, 32, affine_random=False)
    # The module's actual TransposeBatchNorm1d(2) (numerical_embeddings) with
    # awkward N=3*339 (pad-to-k + [:N] slice); tiled two-pass path, C=2 -> k=64.
    check(3, 339, 2, force_two_pass=True, tile_rows=8)
    check(3, 339, 2, force_two_pass=True)              # auto-sized tiles
    # Ragged last tile + a fully-masked clamped tile on the 2nd stats partial.
    check(2, 300, 2, force_two_pass=True, tile_rows=8)
    # C=96 now packs lane-dense to 384 lanes (k=4); both code paths.
    check(2, 40, 96)
    check(2, 40, 96, force_two_pass=True, tile_rows=8)
    # Channel count that cannot pack (kc cap): unpacked fallback, both paths.
    check(2, 48, 200)
    check(2, 48, 200, force_two_pass=True)
    # bf16 inputs (16-row native sublane tiles), fused and two-pass.
    check(2, 256, 2, dtype=jnp.bfloat16)
    check(4, 256, 2, dtype=jnp.bfloat16, force_two_pass=True)

    print("KERNEL_OK")
</pallas_src>

<mosaic_0001>
module attributes {stable_mosaic.version = 11 : i64} {
  func.func @_fused_bn_kernel(%arg0: i32, %arg1: memref<4x128xf32, #tpu.memory_space<vmem>>, %arg2: memref<1x128xf32, #tpu.memory_space<vmem>>, %arg3: memref<1x128xf32, #tpu.memory_space<vmem>>, %arg4: memref<4x128xf32, #tpu.memory_space<vmem>>) attributes {dimension_semantics = [#tpu.dimension_semantics<arbitrary>], iteration_bounds = array<i64: 1>, scalar_prefetch = 0 : i64, scratch_operands = 0 : i64, tpu.core_type = #tpu.core_type<tc>, window_params = [{pipeline_mode = #tpu.pipeline_mode<synchronous>, transform_indices = @transform_0, window_bounds = array<i64: 4, 128>}, {pipeline_mode = #tpu.pipeline_mode<synchronous>, transform_indices = @transform_1, window_bounds = array<i64: 1, 128>}, {pipeline_mode = #tpu.pipeline_mode<synchronous>, transform_indices = @transform_2, window_bounds = array<i64: 1, 128>}, {pipeline_mode = #tpu.pipeline_mode<synchronous>, transform_indices = @transform_3, window_bounds = array<i64: 4, 128>}]} {
    %c0 = arith.constant 0 : index
    %c0_0 = arith.constant 0 : index
    %0 = vector.load %arg1[%c0, %c0_0] : memref<4x128xf32, #tpu.memory_space<vmem>>, vector<4x128xf32>
    %cst = arith.constant dense<0.000000e+00> : vector<128xf32>
    %1 = vector.multi_reduction <add>, %0, %cst [0] : vector<4x128xf32> to vector<128xf32>
    %2 = vector.shape_cast %1 : vector<128xf32> to vector<1x128xf32>
    %3 = arith.mulf %0, %0 : vector<4x128xf32>
    %cst_1 = arith.constant dense<0.000000e+00> : vector<128xf32>
    %4 = vector.multi_reduction <add>, %3, %cst_1 [0] : vector<4x128xf32> to vector<128xf32>
    %5 = vector.shape_cast %4 : vector<128xf32> to vector<1x128xf32>
    %6 = tpu.iota {dimensions = array<i32: 0>} : vector<128x128xi32>
    %c32_i32 = arith.constant 32 : i32
    %c0_i32 = arith.constant 0 : i32
    %7 = arith.cmpi eq, %c32_i32, %c0_i32 : i32
    %c1_i32 = arith.constant 1 : i32
    %8 = arith.select %7, %c1_i32, %c32_i32 : i32
    %9 = vector.broadcast %8 : i32 to vector<128x128xi32>
    %10 = arith.remsi %6, %9 : vector<128x128xi32>
    %c0_i32_2 = arith.constant 0 : i32
    %11 = vector.broadcast %c0_i32_2 : i32 to vector<128x128xi32>
    %12 = arith.cmpi ne, %10, %11 : vector<128x128xi32>
    %c0_i32_3 = arith.constant 0 : i32
    %13 = vector.broadcast %c0_i32_3 : i32 to vector<128x128xi32>
    %14 = arith.cmpi slt, %10, %13 : vector<128x128xi32>
    %c0_i32_4 = arith.constant 0 : i32
    %15 = arith.cmpi slt, %8, %c0_i32_4 : i32
    %16 = vector.broadcast %15 : i1 to vector<128x128xi1>
    %17 = vector.broadcast %16 : vector<128x128xi1> to vector<128x128xi1>
    %18 = arith.xori %14, %17 : vector<128x128xi1>
    %19 = arith.andi %18, %12 : vector<128x128xi1>
    %20 = vector.broadcast %8 : i32 to vector<128x128xi32>
    %21 = arith.addi %10, %20 : vector<128x128xi32>
    %22 = arith.select %19, %21, %10 : vector<128x128xi1>, vector<128x128xi32>
    %23 = tpu.iota {dimensions = array<i32: 1>} : vector<128x128xi32>
    %c32_i32_5 = arith.constant 32 : i32
    %c0_i32_6 = arith.constant 0 : i32
    %24 = arith.cmpi eq, %c32_i32_5, %c0_i32_6 : i32
    %c1_i32_7 = arith.constant 1 : i32
    %25 = arith.select %24, %c1_i32_7, %c32_i32_5 : i32
    %26 = vector.broadcast %25 : i32 to vector<128x128xi32>
    %27 = arith.remsi %23, %26 : vector<128x128xi32>
    %c0_i32_8 = arith.constant 0 : i32
    %28 = vector.broadcast %c0_i32_8 : i32 to vector<128x128xi32>
    %29 = arith.cmpi ne, %27, %28 : vector<128x128xi32>
    %c0_i32_9 = arith.constant 0 : i32
    %30 = vector.broadcast %c0_i32_9 : i32 to vector<128x128xi32>
    %31 = arith.cmpi slt, %27, %30 : vector<128x128xi32>
    %c0_i32_10 = arith.constant 0 : i32
    %32 = arith.cmpi slt, %25, %c0_i32_10 : i32
    %33 = vector.broadcast %32 : i1 to vector<128x128xi1>
    %34 = vector.broadcast %33 : vector<128x128xi1> to vector<128x128xi1>
    %35 = arith.xori %31, %34 : vector<128x128xi1>
    %36 = arith.andi %35, %29 : vector<128x128xi1>
    %37 = vector.broadcast %25 : i32 to vector<128x128xi32>
    %38 = arith.addi %27, %37 : vector<128x128xi32>
    %39 = arith.select %36, %38, %27 : vector<128x128xi1>, vector<128x128xi32>
    %40 = arith.cmpi eq, %22, %39 : vector<128x128xi32>
    %41 = arith.extui %40 : vector<128x128xi1> to vector<128x128xi32>
    %42 = arith.sitofp %41 : vector<128x128xi32> to vector<128x128xf32>
    %cst_11 = arith.constant dense<0.000000e+00> : vector<1x128xf32>
    %43 = tpu.matmul %2, %42, %cst_11 {dimension_numbers = #tpu.dot_dimension_numbers<[1], [0], [0], [1], [0, 0, 1, 1], [], []>} : vector<1x128xf32>, vector<128x128xf32>, vector<1x128xf32> -> vector<1x128xf32>
    %cst_12 = arith.constant dense<0.000000e+00> : vector<1x128xf32>
    %44 = tpu.matmul %5, %42, %cst_12 {dimension_numbers = #tpu.dot_dimension_numbers<[1], [0], [0], [1], [0, 0, 1, 1], [], []>} : vector<1x128xf32>, vector<128x128xf32>, vector<1x128xf32> -> vector<1x128xf32>
    %cst_13 = arith.constant 6.250000e-02 : f32
    %45 = vector.broadcast %cst_13 : f32 to vector<1x128xf32>
    %46 = arith.mulf %43, %45 : vector<1x128xf32>
    %cst_14 = arith.constant 6.250000e-02 : f32
    %47 = vector.broadcast %cst_14 : f32 to vector<1x128xf32>
    %48 = arith.mulf %44, %47 : vector<1x128xf32>
    %49 = arith.mulf %46, %46 : vector<1x128xf32>
    %50 = arith.subf %48, %49 : vector<1x128xf32>
    %cst_15 = arith.constant 0.000000e+00 : f32
    %51 = vector.broadcast %cst_15 : f32 to vector<1x128xf32>
    %52 = arith.maximumf %50, %51 : vector<1x128xf32>
    %cst_16 = arith.constant 9.99999974E-6 : f32
    %53 = vector.broadcast %cst_16 : f32 to vector<1x128xf32>
    %54 = arith.addf %52, %53 : vector<1x128xf32>
    %55 = math.rsqrt %54 : vector<1x128xf32>
    %c0_17 = arith.constant 0 : index
    %c0_18 = arith.constant 0 : index
    %56 = vector.load %arg2[%c0_17, %c0_18] : memref<1x128xf32, #tpu.memory_space<vmem>>, vector<1x128xf32>
    %57 = arith.mulf %56, %55 : vector<1x128xf32>
    %c0_19 = arith.constant 0 : index
    %c0_20 = arith.constant 0 : index
    %58 = vector.load %arg3[%c0_19, %c0_20] : memref<1x128xf32, #tpu.memory_space<vmem>>, vector<1x128xf32>
    %59 = arith.mulf %46, %57 : vector<1x128xf32>
    %60 = arith.subf %58, %59 : vector<1x128xf32>
    %61 = vector.broadcast %57 : vector<1x128xf32> to vector<4x128xf32>
    %62 = arith.mulf %0, %61 : vector<4x128xf32>
    %63 = vector.broadcast %60 : vector<1x128xf32> to vector<4x128xf32>
    %64 = arith.addf %62, %63 : vector<4x128xf32>
    %c0_21 = arith.constant 0 : index
    %c0_22 = arith.constant 0 : index
    %65 = vector.load %arg4[%c0_21, %c0_22] : memref<4x128xf32, #tpu.memory_space<vmem>>, vector<4x128xf32>
    tpu.vector_store %arg4[%c0_21, %c0_22], %64 {strides = array<i32>} : memref<4x128xf32, #tpu.memory_space<vmem>>, vector<4x128xf32>,
    return
  }
  func.func @transform_0(%arg0: i32) -> (i32, i32) {
    %c0_i32 = arith.constant 0 : i32
    %c0_i32_0 = arith.constant 0 : i32
    %c0_i32_1 = arith.constant 0 : i32
    return %c0_i32, %c0_i32_0 : i32, i32
  }
  func.func @transform_1(%arg0: i32) -> (i32, i32) {
    %c0_i32 = arith.constant 0 : i32
    %c0_i32_0 = arith.constant 0 : i32
    %c0_i32_1 = arith.constant 0 : i32
    return %c0_i32, %c0_i32_0 : i32, i32
  }
  func.func @transform_2(%arg0: i32) -> (i32, i32) {
    %c0_i32 = arith.constant 0 : i32
    %c0_i32_0 = arith.constant 0 : i32
    %c0_i32_1 = arith.constant 0 : i32
    return %c0_i32, %c0_i32_0 : i32, i32
  }
  func.func @transform_3(%arg0: i32) -> (i32, i32) {
    %c0_i32 = arith.constant 0 : i32
    %c0_i32_0 = arith.constant 0 : i32
    %c0_i32_1 = arith.constant 0 : i32
    return %c0_i32, %c0_i32_0 : i32, i32
  }
}

</mosaic_0001>

<llo_original>
// kernel: tpu_custom_call.1
$region0: #{tpu_custom_call.1}
  #allocation0 [shape = 'u32[]', space=smem, size = 0x4, offset = 0x4, fixed_abs, tag = 'smem constant byte address 0x4 - core index']
  #allocation1 [shape = 'u32[144,128]{1,0:T(1,128)}', space=vmem, size = 0x12000, scoped, tag = 'internal scratch']
  %s0 = inlined_call_operand.hbm [shape: f32[4,128], index: 0, kind: input, shape index: {}]
  %s1 = inlined_call_operand.vmem [shape: f32[1,128], index: 1, kind: input, shape index: {}]
  %s2 = inlined_call_operand.vmem [shape: f32[1,128], index: 2, kind: input, shape index: {}]
  %s3 = inlined_call_operand.hbm [shape: f32[4,128], index: 3, kind: output, shape index: {}]
  %s4 = sld [smem:[#allocation0]]
  $region26: #{tpu_custom_call.1} parent=0
    _
  %s6 = ssub.s32 1, %s4
  %s7 = scalar_select 0, %s6, %s4
  $region1: #{tpu_custom_call.1} parent=0
    #allocation2 [shape = 'u8[2048]{0}', space=vmem, size = 0x800, scoped, tag = 'input window, operand 0, single buffered']
    #allocation3 [shape = 's32[1]{0}', space=sflag, size = 0x4, scoped, tag = 'scoped memory for tpu_custom_call.1']
    #allocation4 [shape = 's32[1]{0}', space=sflag, size = 0x4, scoped, tag = 'scoped memory for tpu_custom_call.1']
    #allocation5 [shape = 'u8[2048]{0}', space=vmem, size = 0x800, scoped, tag = 'output window, operand 0, single buffered']
    %8 = vsyncpa [#allocation3], 0
    %9 = vsyncpa [#allocation4], 0
    // Predicated region
    $region2: #{tpu_custom_call.1} parent=1 // pred_check
      _
    $region3: #{tpu_custom_call.1} parent=1 // pred_check_branch
      %11 = sbr.rel (0) target = $region5
    $region4: #{tpu_custom_call.1} parent=1 // pred_region
      %s13 = ssub.s32 64, 64
      %14 = vsyncadd [#allocation3], %s13
      %s16 = sshll.u32 [#allocation2], 4
      %s17 = int_to_ptr.vmem [resolvable:$true] %s16
      %19 = dma.hbm_to_vmem [thread:$0]  %s0, 64, %s17, [#allocation3]
    $region5: #{tpu_custom_call.1} parent=1 // pred_fallthru
      _
    // Predicated region
    $region6: #{tpu_custom_call.1} parent=1 // pred_check
      _
    $region7: #{tpu_custom_call.1} parent=1 // pred_check_branch
      %21 = sbr.rel (0) target = $region9
    $region8: #{tpu_custom_call.1} parent=1 // pred_region
      _
    $region9: #{tpu_custom_call.1} parent=1 // pred_fallthru
      _
    // Predicated region
    $region10: #{tpu_custom_call.1} parent=1 // pred_check
      _
    $region11: #{tpu_custom_call.1} parent=1 // pred_check_branch
      %23 = sbr.rel (0) target = $region13
    $region12: #{tpu_custom_call.1} parent=1 // pred_region
      _
    $region13: #{tpu_custom_call.1} parent=1 // pred_fallthru
      _
    // Predicated region
    $region14: #{tpu_custom_call.1} parent=1 // pred_check
      _
    $region15: #{tpu_custom_call.1} parent=1 // pred_check_branch
      %25 = sbr.rel (0) target = $region17
    $region16: #{tpu_custom_call.1} parent=1 // pred_region
      %26 = dma.done [#allocation3], 64
    $region17: #{tpu_custom_call.1} parent=1 // pred_fallthru
      _
    %v27 = vld [vmem:[#allocation2] sm:$0xf]
    %vm28 = vcmask 1043456
    %v29 = vsel %vm28, %v27, 0.0
    %v30 = vrot.slane %v29, 4
    %v31 = vadd.f32 %v29, %v30
    %v32 = vrot.slane %v31, 2
    %v33 = vadd.f32 %v31, %v32
    %v34 = vrot.slane %v33, 1
    %v35 = vadd.f32 %v33, %v34
    %v36 = vmul.f32 %v27, %v27
    %v37 = vsel %vm28, %v36, 0.0
    %v38 = vrot.slane %v37, 4
    %v39 = vadd.f32 %v37, %v38
    %v40 = vrot.slane %v39, 2
    %v41 = vadd.f32 %v39, %v40
    %v42 = vrot.slane %v41, 1
    %v43 = vadd.f32 %v41, %v42
    %v44 = vlaneseq
    %v45 = vshrl.u32 %v44, 7
    %v46 = vadd.s32 %v45, 8
    %v47 = vadd.s32 %v45, 16
    %v48 = vadd.s32 %v45, 24
    %v49 = vadd.s32 %v45, 32
    %v50 = vadd.s32 %v45, 40
    %v51 = vadd.s32 %v45, 48
    %v52 = vadd.s32 %v45, 56
    %v53 = vadd.s32 %v45, 64
    %v54 = vadd.s32 %v45, 72
    %v55 = vadd.s32 %v45, 80
    %v56 = vadd.s32 %v45, 88
    %v57 = vadd.s32 %v45, 96
    %v58 = vadd.s32 %v45, 104
    %v59 = vadd.s32 %v45, 112
    %v60 = vadd.s32 %v45, 120
    %vm61 = vcmp.lt.s32.totalorder %v45, 0
    %v62 = vsub.s32 0, %v45
    %v63 = vsel %vm61, %v62, %v45
    %v64 = vshrl.u32 %v63, 5
    %v65 = vand.u32 %v63, 31
    %v66 = vsub.s32 0, %v65
    %v67 = vsel %vm61, %v66, %v65
    %vm68 = vcmp.lt.s32.totalorder %v46, 0
    %v69 = vsub.s32 0, %v46
    %v70 = vsel %vm68, %v69, %v46
    %v71 = vshrl.u32 %v70, 5
    %v72 = vand.u32 %v70, 31
    %v73 = vsub.s32 0, %v72
    %v74 = vsel %vm68, %v73, %v72
    %vm75 = vcmp.lt.s32.totalorder %v47, 0
    %v76 = vsub.s32 0, %v47
    %v77 = vsel %vm75, %v76, %v47
    %v78 = vshrl.u32 %v77, 5
    %v79 = vand.u32 %v77, 31
    %v80 = vsub.s32 0, %v79
    %v81 = vsel %vm75, %v80, %v79
    %vm82 = vcmp.lt.s32.totalorder %v48, 0
    %v83 = vsub.s32 0, %v48
    %v84 = vsel %vm82, %v83, %v48
    %v85 = vshrl.u32 %v84, 5
    %v86 = vand.u32 %v84, 31
    %v87 = vsub.s32 0, %v86
    %v88 = vsel %vm82, %v87, %v86
    %vm89 = vcmp.lt.s32.totalorder %v49, 0
    %v90 = vsub.s32 0, %v49
    %v91 = vsel %vm89, %v90, %v49
    %v92 = vshrl.u32 %v91, 5
    %v93 = vand.u32 %v91, 31
    %v94 = vsub.s32 0, %v93
    %v95 = vsel %vm89, %v94, %v93
    %vm96 = vcmp.lt.s32.totalorder %v50, 0
    %v97 = vsub.s32 0, %v50
    %v98 = vsel %vm96, %v97, %v50
    %v99 = vshrl.u32 %v98, 5
    %v100 = vand.u32 %v98, 31
    %v101 = vsub.s32 0, %v100
    %v102 = vsel %vm96, %v101, %v100
    %vm103 = vcmp.lt.s32.totalorder %v51, 0
    %v104 = vsub.s32 0, %v51
    %v105 = vsel %vm103, %v104, %v51
    %v106 = vshrl.u32 %v105, 5
    %v107 = vand.u32 %v105, 31
    %v108 = vsub.s32 0, %v107
    %v109 = vsel %vm103, %v108, %v107
    %vm110 = vcmp.lt.s32.totalorder %v52, 0
    %v111 = vsub.s32 0, %v52
    %v112 = vsel %vm110, %v111, %v52
    %v113 = vshrl.u32 %v112, 5
    %v114 = vand.u32 %v112, 31
    %v115 = vsub.s32 0, %v114
    %v116 = vsel %vm110, %v115, %v114
    %vm117 = vcmp.lt.s32.totalorder %v53, 0
    %v118 = vsub.s32 0, %v53
    %v119 = vsel %vm117, %v118, %v53
    %v120 = vshrl.u32 %v119, 5
    %v121 = vand.u32 %v119, 31
    %v122 = vsub.s32 0, %v121
    %v123 = vsel %vm117, %v122, %v121
    %vm124 = vcmp.lt.s32.totalorder %v54, 0
    %v125 = vsub.s32 0, %v54
    %v126 = vsel %vm124, %v125, %v54
    %v127 = vshrl.u32 %v126, 5
    %v128 = vand.u32 %v126, 31
    %v129 = vsub.s32 0, %v128
    %v130 = vsel %vm124, %v129, %v128
    %vm131 = vcmp.lt.s32.totalorder %v55, 0
    %v132 = vsub.s32 0, %v55
    %v133 = vsel %vm131, %v132, %v55
    %v134 = vshrl.u32 %v133, 5
    %v135 = vand.u32 %v133, 31
    %v136 = vsub.s32 0, %v135
    %v137 = vsel %vm131, %v136, %v135
    %vm138 = vcmp.lt.s32.totalorder %v56, 0
    %v139 = vsub.s32 0, %v56
    %v140 = vsel %vm138, %v139, %v56
    %v141 = vshrl.u32 %v140, 5
    %v142 = vand.u32 %v140, 31
    %v143 = vsub.s32 0, %v142
    %v144 = vsel %vm138, %v143, %v142
    %vm145 = vcmp.lt.s32.totalorder %v57, 0
    %v146 = vsub.s32 0, %v57
    %v147 = vsel %vm145, %v146, %v57
    %v148 = vshrl.u32 %v147, 5
    %v149 = vand.u32 %v147, 31
    %v150 = vsub.s32 0, %v149
    %v151 = vsel %vm145, %v150, %v149
    %vm152 = vcmp.lt.s32.totalorder %v58, 0
    %v153 = vsub.s32 0, %v58
    %v154 = vsel %vm152, %v153, %v58
    %v155 = vshrl.u32 %v154, 5
    %v156 = vand.u32 %v154, 31
    %v157 = vsub.s32 0, %v156
    %v158 = vsel %vm152, %v157, %v156
    %vm159 = vcmp.lt.s32.totalorder %v59, 0
    %v160 = vsub.s32 0, %v59
    %v161 = vsel %vm159, %v160, %v59
    %v162 = vshrl.u32 %v161, 5
    %v163 = vand.u32 %v161, 31
    %v164 = vsub.s32 0, %v163
    %v165 = vsel %vm159, %v164, %v163
    %vm166 = vcmp.lt.s32.totalorder %v60, 0
    %v167 = vsub.s32 0, %v60
    %v168 = vsel %vm166, %v167, %v60
    %v169 = vshrl.u32 %v168, 5
    %v170 = vand.u32 %v168, 31
    %v171 = vsub.s32 0, %v170
    %v172 = vsel %vm166, %v171, %v170
    %vm173 = vcmp.ne.s32.totalorder %v67, 0
    %vm174 = vcmp.ne.s32.totalorder %v74, 0
    %vm175 = vcmp.ne.s32.totalorder %v81, 0
    %vm176 = vcmp.ne.s32.totalorder %v88, 0
    %vm177 = vcmp.ne.s32.totalorder %v95, 0
    %vm178 = vcmp.ne.s32.totalorder %v102, 0
    %vm179 = vcmp.ne.s32.totalorder %v109, 0
    %vm180 = vcmp.ne.s32.totalorder %v116, 0
    %vm181 = vcmp.ne.s32.totalorder %v123, 0
    %vm182 = vcmp.ne.s32.totalorder %v130, 0
    %vm183 = vcmp.ne.s32.totalorder %v137, 0
    %vm184 = vcmp.ne.s32.totalorder %v144, 0
    %vm185 = vcmp.ne.s32.totalorder %v151, 0
    %vm186 = vcmp.ne.s32.totalorder %v158, 0
    %vm187 = vcmp.ne.s32.totalorder %v165, 0
    %vm188 = vcmp.ne.s32.totalorder %v172, 0
    %vm189 = vcmp.lt.s32.totalorder %v67, 0
    %vm190 = vcmp.lt.s32.totalorder %v74, 0
    %vm191 = vcmp.lt.s32.totalorder %v81, 0
    %vm192 = vcmp.lt.s32.totalorder %v88, 0
    %vm193 = vcmp.lt.s32.totalorder %v95, 0
    %vm194 = vcmp.lt.s32.totalorder %v102, 0
    %vm195 = vcmp.lt.s32.totalorder %v109, 0
    %vm196 = vcmp.lt.s32.totalorder %v116, 0
    %vm197 = vcmp.lt.s32.totalorder %v123, 0
    %vm198 = vcmp.lt.s32.totalorder %v130, 0
    %vm199 = vcmp.lt.s32.totalorder %v137, 0
    %vm200 = vcmp.lt.s32.totalorder %v144, 0
    %vm201 = vcmp.lt.s32.totalorder %v151, 0
    %vm202 = vcmp.lt.s32.totalorder %v158, 0
    %vm203 = vcmp.lt.s32.totalorder %v165, 0
    %vm204 = vcmp.lt.s32.totalorder %v172, 0
    %vm205 = vmand %vm189, %vm173
    %vm206 = vmand %vm190, %vm174
    %vm207 = vmand %vm191, %vm175
    %vm208 = vmand %vm192, %vm176
    %vm209 = vmand %vm193, %vm177
    %vm210 = vmand %vm194, %vm178
    %vm211 = vmand %vm195, %vm179
    %vm212 = vmand %vm196, %vm180
    %vm213 = vmand %vm197, %vm181
    %vm214 = vmand %vm198, %vm182
    %vm215 = vmand %vm199, %vm183
    %vm216 = vmand %vm200, %vm184
    %vm217 = vmand %vm201, %vm185
    %vm218 = vmand %vm202, %vm186
    %vm219 = vmand %vm203, %vm187
    %vm220 = vmand %vm204, %vm188
    %v221 = vadd.s32 %v67, 32
    %v222 = vadd.s32 %v74, 32
    %v223 = vadd.s32 %v81, 32
    %v224 = vadd.s32 %v88, 32
    %v225 = vadd.s32 %v95, 32
    %v226 = vadd.s32 %v102, 32
    %v227 = vadd.s32 %v109, 32
    %v228 = vadd.s32 %v116, 32
    %v229 = vadd.s32 %v123, 32
    %v230 = vadd.s32 %v130, 32
    %v231 = vadd.s32 %v137, 32
    %v232 = vadd.s32 %v144, 32
    %v233 = vadd.s32 %v151, 32
    %v234 = vadd.s32 %v158, 32
    %v235 = vadd.s32 %v165, 32
    %v236 = vadd.s32 %v172, 32
    %v237 = vsel %vm205, %v221, %v67
    %v238 = vsel %vm206, %v222, %v74
    %v239 = vsel %vm207, %v223, %v81
    %v240 = vsel %vm208, %v224, %v88
    %v241 = vsel %vm209, %v225, %v95
    %v242 = vsel %vm210, %v226, %v102
    %v243 = vsel %vm211, %v227, %v109
    %v244 = vsel %vm212, %v228, %v116
    %v245 = vsel %vm213, %v229, %v123
    %v246 = vsel %vm214, %v230, %v130
    %v247 = vsel %vm215, %v231, %v137
    %v248 = vsel %vm216, %v232, %v144
    %v249 = vsel %vm217, %v233, %v151
    %v250 = vsel %vm218, %v234, %v158
    %v251 = vsel %vm219, %v235, %v165
    %v252 = vsel %vm220, %v236, %v172
    %v253 = vlaneseq
    %v254 = vand.u32 %v253, 127
    %vm255 = vcmp.lt.s32.totalorder %v254, 0
    %v256 = vsub.s32 0, %v254
    %v257 = vsel %vm255, %v256, %v254
    %v258 = vshrl.u32 %v257, 5
    %v259 = vand.u32 %v257, 31
    %v260 = vsub.s32 0, %v259
    %v261 = vsel %vm255, %v260, %v259
    %vm262 = vcmp.ne.s32.totalorder %v261, 0
    %vm263 = vcmp.lt.s32.totalorder %v261, 0
    %vm264 = vmand %vm263, %vm262
    %v265 = vadd.s32 %v261, 32
    %v266 = vsel %vm264, %v265, %v261
    %vm267 = vcmp.eq.s32.totalorder %v237, %v266
    %vm268 = vcmp.eq.s32.totalorder %v238, %v266
    %vm269 = vcmp.eq.s32.totalorder %v239, %v266
    %vm270 = vcmp.eq.s32.totalorder %v240, %v266
    %vm271 = vcmp.eq.s32.totalorder %v241, %v266
    %vm272 = vcmp.eq.s32.totalorder %v242, %v266
    %vm273 = vcmp.eq.s32.totalorder %v243, %v266
    %vm274 = vcmp.eq.s32.totalorder %v244, %v266
    %vm275 = vcmp.eq.s32.totalorder %v245, %v266
    %vm276 = vcmp.eq.s32.totalorder %v246, %v266
    %vm277 = vcmp.eq.s32.totalorder %v247, %v266
    %vm278 = vcmp.eq.s32.totalorder %v248, %v266
    %vm279 = vcmp.eq.s32.totalorder %v249, %v266
    %vm280 = vcmp.eq.s32.totalorder %v250, %v266
    %vm281 = vcmp.eq.s32.totalorder %v251, %v266
    %vm282 = vcmp.eq.s32.totalorder %v252, %v266
    %v283 = vsel %vm267, 1, 0
    %v284 = vsel %vm268, 1, 0
    %v285 = vsel %vm269, 1, 0
    %v286 = vsel %vm270, 1, 0
    %v287 = vsel %vm271, 1, 0
    %v288 = vsel %vm272, 1, 0
    %v289 = vsel %vm273, 1, 0
    %v290 = vsel %vm274, 1, 0
    %v291 = vsel %vm275, 1, 0
    %v292 = vsel %vm276, 1, 0
    %v293 = vsel %vm277, 1, 0
    %v294 = vsel %vm278, 1, 0
    %v295 = vsel %vm279, 1, 0
    %v296 = vsel %vm280, 1, 0
    %v297 = vsel %vm281, 1, 0
    %v298 = vsel %vm282, 1, 0
    %v299 = vcvt.s32.f32 %v283
    %v300 = vcvt.s32.f32 %v284
    %v301 = vcvt.s32.f32 %v285
    %v302 = vcvt.s32.f32 %v286
    %v303 = vcvt.s32.f32 %v287
    %v304 = vcvt.s32.f32 %v288
    %v305 = vcvt.s32.f32 %v289
    %v306 = vcvt.s32.f32 %v290
    %v307 = vcvt.s32.f32 %v291
    %v308 = vcvt.s32.f32 %v292
    %v309 = vcvt.s32.f32 %v293
    %v310 = vcvt.s32.f32 %v294
    %v311 = vcvt.s32.f32 %v295
    %v312 = vcvt.s32.f32 %v296
    %v313 = vcvt.s32.f32 %v297
    %v314 = vcvt.s32.f32 %v298
    %315 = vmatprep.subr.mxu0 0.0
    %316 = vmatpush1.msra.mxu0 %v299
    %317 = vmatprep.subr.mxu0 0.0
    %318 = vmatpush1.msra.mxu0 %v300
    %319 = vmatprep.subr.mxu0 0.0
    %320 = vmatpush1.msra.mxu0 %v301
    %321 = vmatprep.subr.mxu0 0.0
    %322 = vmatpush1.msra.mxu0 %v302
    %323 = vmatprep.subr.mxu0 0.0
    %324 = vmatpush1.msra.mxu0 %v303
    %325 = vmatprep.subr.mxu0 0.0
    %326 = vmatpush1.msra.mxu0 %v304
    %327 = vmatprep.subr.mxu0 0.0
    %328 = vmatpush1.msra.mxu0 %v305
    %329 = vmatprep.subr.mxu0 0.0
    %330 = vmatpush1.msra.mxu0 %v306
    %331 = vmatprep.subr.mxu0 0.0
    %332 = vmatpush1.msra.mxu0 %v307
    %333 = vmatprep.subr.mxu0 0.0
    %334 = vmatpush1.msra.mxu0 %v308
    %335 = vmatprep.subr.mxu0 0.0
    %336 = vmatpush1.msra.mxu0 %v309
    %337 = vmatprep.subr.mxu0 0.0
    %338 = vmatpush1.msra.mxu0 %v310
    %339 = vmatprep.subr.mxu0 0.0
    %340 = vmatpush1.msra.mxu0 %v311
    %341 = vmatprep.subr.mxu0 0.0
    %342 = vmatpush1.msra.mxu0 %v312
    %343 = vmatprep.subr.mxu0 0.0
    %344 = vmatpush1.msra.mxu0 %v313
    %345 = vmatprep.subr.mxu0 0.0
    %346 = vmatpush1.msra.mxu0 %v314
    %347 = vmatprep.subr.mxu0 0.0
    %348 = vmatpush1.msra.mxu0 0.0
    %349 = vmatprep.subr.mxu0 0.0
    %350 = vmatpush1.msra.mxu0 0.0
    %351 = vmatprep.subr.mxu0 0.0
    %352 = vmatpush1.msra.mxu0 0.0
    %353 = vmatprep.subr.mxu0 0.0
    %354 = vmatpush1.msra.mxu0 0.0
    %355 = vmatprep.subr.mxu0 0.0
    %356 = vmatpush1.msra.mxu0 0.0
    %357 = vmatprep.subr.mxu0 0.0
    %358 = vmatpush1.msra.mxu0 0.0
    %359 = vmatprep.subr.mxu0 0.0
    %360 = vmatpush1.msra.mxu0 0.0
    %361 = vmatprep.subr.mxu0 0.0
    %362 = vmatpush1.msra.mxu0 0.0
    %363 = vmatprep.subr.mxu0 0.0
    %364 = vmatpush1.msra.mxu0 0.0
    %365 = vmatprep.subr.mxu0 0.0
    %366 = vmatpush1.msra.mxu0 0.0
    %367 = vmatprep.subr.mxu0 0.0
    %368 = vmatpush1.msra.mxu0 0.0
    %369 = vmatprep.subr.mxu0 0.0
    %370 = vmatpush1.msra.mxu0 0.0
    %371 = vmatprep.subr.mxu0 0.0
    %372 = vmatpush1.msra.mxu0 0.0
    %373 = vmatprep.subr.mxu0 0.0
    %374 = vmatpush1.msra.mxu0 0.0
    %375 = vmatprep.subr.mxu0 0.0
    %376 = vmatpush1.msra.mxu0 0.0
    %377 = vmatprep.subr.mxu0 0.0
    %378 = vmatpush1.msra.mxu0 0.0
    %379 = vmatprep.mubr.f32.mxu0 0.0
    %380 = vmatmul.mubr.f32.gmra.mrb[0].mxu0 %v35
    %v381 = vpop.f32.mrb[0].mxu0
    %v382 = vadd.f32 0.0, %v381
    %v383 = vpop.f32.mrb[0].mxu0
    %384 = vdwg.mxu0
    %385 = vmatprep.subr.mxu0 0.0
    %386 = vmatpush1.msra.mxu0 %v299
    %387 = vmatprep.subr.mxu0 0.0
    %388 = vmatpush1.msra.mxu0 %v300
    %389 = vmatprep.subr.mxu0 0.0
    %390 = vmatpush1.msra.mxu0 %v301
    %391 = vmatprep.subr.mxu0 0.0
    %392 = vmatpush1.msra.mxu0 %v302
    %393 = vmatprep.subr.mxu0 0.0
    %394 = vmatpush1.msra.mxu0 %v303
    %395 = vmatprep.subr.mxu0 0.0
    %396 = vmatpush1.msra.mxu0 %v304
    %397 = vmatprep.subr.mxu0 0.0
    %398 = vmatpush1.msra.mxu0 %v305
    %399 = vmatprep.subr.mxu0 0.0
    %400 = vmatpush1.msra.mxu0 %v306
    %401 = vmatprep.subr.mxu0 0.0
    %402 = vmatpush1.msra.mxu0 %v307
    %403 = vmatprep.subr.mxu0 0.0
    %404 = vmatpush1.msra.mxu0 %v308
    %405 = vmatprep.subr.mxu0 0.0
    %406 = vmatpush1.msra.mxu0 %v309
    %407 = vmatprep.subr.mxu0 0.0
    %408 = vmatpush1.msra.mxu0 %v310
    %409 = vmatprep.subr.mxu0 0.0
    %410 = vmatpush1.msra.mxu0 %v311
    %411 = vmatprep.subr.mxu0 0.0
    %412 = vmatpush1.msra.mxu0 %v312
    %413 = vmatprep.subr.mxu0 0.0
    %414 = vmatpush1.msra.mxu0 %v313
    %415 = vmatprep.subr.mxu0 0.0
    %416 = vmatpush1.msra.mxu0 %v314
    %417 = vmatprep.subr.mxu0 0.0
    %418 = vmatpush1.msra.mxu0 0.0
    %419 = vmatprep.subr.mxu0 0.0
    %420 = vmatpush1.msra.mxu0 0.0
    %421 = vmatprep.subr.mxu0 0.0
    %422 = vmatpush1.msra.mxu0 0.0
    %423 = vmatprep.subr.mxu0 0.0
    %424 = vmatpush1.msra.mxu0 0.0
    %425 = vmatprep.subr.mxu0 0.0
    %426 = vmatpush1.msra.mxu0 0.0
    %427 = vmatprep.subr.mxu0 0.0
    %428 = vmatpush1.msra.mxu0 0.0
    %429 = vmatprep.subr.mxu0 0.0
    %430 = vmatpush1.msra.mxu0 0.0
    %431 = vmatprep.subr.mxu0 0.0
    %432 = vmatpush1.msra.mxu0 0.0
    %433 = vmatprep.subr.mxu0 0.0
    %434 = vmatpush1.msra.mxu0 0.0
    %435 = vmatprep.subr.mxu0 0.0
    %436 = vmatpush1.msra.mxu0 0.0
    %437 = vmatprep.subr.mxu0 0.0
    %438 = vmatpush1.msra.mxu0 0.0
    %439 = vmatprep.subr.mxu0 0.0
    %440 = vmatpush1.msra.mxu0 0.0
    %441 = vmatprep.subr.mxu0 0.0
    %442 = vmatpush1.msra.mxu0 0.0
    %443 = vmatprep.subr.mxu0 0.0
    %444 = vmatpush1.msra.mxu0 0.0
    %445 = vmatprep.subr.mxu0 0.0
    %446 = vmatpush1.msra.mxu0 0.0
    %447 = vmatprep.subr.mxu0 0.0
    %448 = vmatpush1.msra.mxu0 0.0
    %449 = vmatprep.mubr.f32.mxu0 0.0
    %450 = vmatmul.mubr.f32.gmra.mrb[0].mxu0 %v43
    %v451 = vpop.f32.mrb[0].mxu0
    %v452 = vadd.f32 0.0, %v451
    %v453 = vpop.f32.mrb[0].mxu0
    %454 = vdwg.mxu0
    %v455 = vmul.f32 %v382, 0.0625
    %v456 = vmul.f32 %v452, 0.0625
    %v457 = vmul.f32 %v455, %v455
    %v458 = vsub.f32 %v456, %v457
    %v459 = vmax.f32 %v458, 0.0
    %v460 = vadd.f32 %v459, 1e-05
    %v461 = vrsqrt.pop %v460
    %v462 = vld [vmem:[%s1] sm:$0x1]
    %v463 = vmul.f32 %v462, %v461
    %v464 = vld [vmem:[%s2] sm:$0x1]
    %v465 = vmul.f32 %v455, %v463
    %v466 = vsub.f32 %v464, %v465
    %v468 = vlaneseq
    %v469 = vshrl.u32 %v468, 7
    %v470 = vsub.s32 0, %v469
    %v471 = vrot.slane %v463, %v470
    %v473 = vmul.f32 %v27, %v471
    %v475 = vlaneseq
    %v476 = vshrl.u32 %v475, 7
    %v477 = vsub.s32 0, %v476
    %v478 = vrot.slane %v466, %v477
    %v480 = vadd.f32 %v473, %v478
    %481 = vst [vmem:[#allocation5] sm:$0xf] %v480
    // Predicated region
    $region18: #{tpu_custom_call.1} parent=1 // pred_check
      _
    $region19: #{tpu_custom_call.1} parent=1 // pred_check_branch
      %483 = sbr.rel (0) target = $region21
    $region20: #{tpu_custom_call.1} parent=1 // pred_region
      %s485 = ssub.s32 64, 64
      %486 = vsyncadd [#allocation4], %s485
      %s488 = sshll.u32 [#allocation5], 4
      %s489 = int_to_ptr.vmem [resolvable:$true] %s488
      %491 = dma.vmem_to_hbm [thread:$0]  %s489, 64, %s3, [#allocation4]
    $region21: #{tpu_custom_call.1} parent=1 // pred_fallthru
      _
    // Predicated region
    $region22: #{tpu_custom_call.1} parent=1 // pred_check
      _
    $region23: #{tpu_custom_call.1} parent=1 // pred_check_branch
      %493 = sbr.rel (0) target = $region25
    $region24: #{tpu_custom_call.1} parent=1 // pred_region
      %494 = dma.done [#allocation4], 64
    $region25: #{tpu_custom_call.1} parent=1 // pred_fallthru
      _
    %495 = vsyncpa [#allocation3], 1
    %496 = vsyncpa [#allocation4], 1

</llo_original>
